<compile_context>
chip_gen: v7x
topology: tpu7x:2x2x1
jax: 0.10.0
libtpu: 0.0.40
codegen_flags: <defaults>
</compile_context>

<pallas_src>
import jax
import jax.numpy as jnp
from jax.experimental import pallas as pl
from jax.experimental.pallas import tpu as pltpu


_ACC_LANES = 512      # lane-dense accumulator width (multiple of 128)
_MAX_CHUNKS = 192     # cap on unrolled 512-lane chunks per grid step


def _round_up(a, b):
    return -(-a // b) * b


def _cdiv(a, b):
    return -(-a // b)


def _chip_defaults():
    """(vmem_capacity_bytes, num_tensorcores, min_step_dma_bytes), safe fallbacks."""
    vmem_cap = 64 << 20          # conservative minimum across v5e/v6e/v7x
    num_tc = 1
    min_step = 3 << 19           # ~1.5 MiB per grid step
    try:
        info = pltpu.get_tpu_info()
        cap = int(getattr(info, "vmem_capacity_bytes", 0) or 0)
        if cap > 0:
            vmem_cap = cap
    except Exception:
        pass
    try:
        kind = jax.devices()[0].device_kind.lower()
        if "v7" in kind or "7x" in kind:
            num_tc, min_step = 2, 3 << 20     # 2 TCs/chip, ~3 MiB/step (3.2 TB/s HBM)
        elif "v6" in kind:
            num_tc, min_step = 1, 3 << 19     # ~1.5 MiB/step
        else:
            num_tc, min_step = 1, 1 << 20     # v5e-ish: ~1 MiB/step
    except Exception:
        pass
    return vmem_cap, num_tc, min_step


def _pick_pack_factor(bs, n, min_itemsize):
    """Smallest s dividing n (free reshape, no padding) so bs*s fills vreg sublanes."""
    packing = max(1, 4 // max(1, min_itemsize))   # rows packed per 32-bit sublane word
    for req in (8 * packing, 8):
        for s in range(1, 8 * packing + 1):
            if n % s == 0 and (bs * s) % req == 0:
                return s
    return 1


def _build_kernel(rows, tile, m_cols, tiles_per_p, needs_mask):
    n_chunks = tile // _ACC_LANES

    def _accumulate(x, t, inter_ref, denom_ref):
        acc_i = inter_ref[...]
        acc_d = denom_ref[...]
        for g in range(n_chunks):                      # static 512-lane chunks: VALU only
            lo = g * _ACC_LANES
            xs = x[:, lo:lo + _ACC_LANES]
            ts = t[:, lo:lo + _ACC_LANES]
            acc_i = acc_i + xs * ts
            acc_d = acc_d + (xs + ts)                  # sum(x)+sum(t) fused as sum(x+t)
        inter_ref[...] = acc_i
        denom_ref[...] = acc_d

    def kernel(x_ref, t_ref, inter_ref, denom_ref):
        p = pl.program_id(0)
        k = pl.program_id(1)

        @pl.when(k == 0)
        def _():
            inter_ref[...] = jnp.zeros_like(inter_ref)
            denom_ref[...] = jnp.zeros_like(denom_ref)

        x = x_ref[...].astype(jnp.float32)
        t = t_ref[...].astype(jnp.float32)

        if not needs_mask:
            _accumulate(x, t, inter_ref, denom_ref)
        else:
            col_start = (p * tiles_per_p + k) * tile   # unclamped global column start
            is_full = col_start + tile <= m_cols

            @pl.when(is_full)
            def _():                                   # hot path: no masking cost
                _accumulate(x, t, inter_ref, denom_ref)

            @pl.when(jnp.logical_not(is_full))
            def _():                                   # ragged / duplicated tile
                lane = jax.lax.broadcasted_iota(jnp.int32, (rows, tile), 1)
                valid = (lane + col_start) < m_cols
                zero = jnp.zeros_like(x)
                _accumulate(jnp.where(valid, x, zero),
                            jnp.where(valid, t, zero),
                            inter_ref, denom_ref)

    return kernel


def binary_dice_loss(x, target, smooth=1.0, *,
                     num_parallel=None, tile_cols=None, vmem_budget_bytes=None):
    """Pallas implementation of BinaryDiceLoss.forward. Returns a scalar loss."""
    bs = x.shape[0]
    xf = x.reshape(bs, -1)
    tf = target.reshape(bs, -1)
    n = xf.shape[1]

    vmem_cap, num_tc, min_step_bytes = _chip_defaults()
    if num_parallel is None:
        num_parallel = num_tc                 # 2 only on v7x; 1 on v5e/v6e
    num_parallel = max(1, int(num_parallel))
    if vmem_budget_bytes is None:
        vmem_budget_bytes = min(vmem_cap // 4, 32 << 20)

    # Sublane packing without padding: (bs, n) -> (bs*s, n//s) with s | n.
    min_item = min(xf.dtype.itemsize, tf.dtype.itemsize)
    s = _pick_pack_factor(bs, n, min_item)
    rows = bs * s
    m = n // s
    bytes_per_col = rows * (xf.dtype.itemsize + tf.dtype.itemsize)

    # Feature tile (multiple of 512): VMEM-budgeted, per-step DMA floor scaled
    # by generation, ~6 pipelined reduction steps per slice.
    G = _ACC_LANES
    if tile_cols is None:
        per_slice = _cdiv(m, num_parallel)
        t_target = _round_up(_cdiv(per_slice, 6), G)
        t_min = _round_up(max(1, min_step_bytes // max(1, bytes_per_col)), G)
        t_max = max(G, (vmem_budget_bytes // (2 * max(1, bytes_per_col))) // G * G)
        tile = min(max(t_target, t_min), t_max)
        tile = min(tile, _MAX_CHUNKS * G)
        tile = min(tile, _round_up(per_slice, G))
        tile = max(tile, G)
    else:
        tile = max(G, _round_up(int(tile_cols), G))

    total_tiles = _cdiv(m, tile)
    if total_tiles < 2 * num_parallel:
        num_parallel = 1                      # too little work to split across TCs
    tiles_per_p = _cdiv(total_tiles, num_parallel)
    needs_mask = (num_parallel * tiles_per_p * tile) != m

    xr = xf.reshape(rows, m)                  # free, contiguous reshape (no copy)
    tr = tf.reshape(rows, m)

    if num_parallel * tiles_per_p == total_tiles:
        in_map = lambda p, k: (0, p * tiles_per_p + k)
    else:
        # Clamp duplicated trailing tiles (fully masked in-kernel) so the DMA
        # never addresses a block that is entirely out of bounds.
        in_map = lambda p, k: (0, jnp.minimum(p * tiles_per_p + k, total_tiles - 1))
    out_map = lambda p, k: (p, 0, 0)

    footprint = 2 * tile * bytes_per_col      # double-buffered input blocks
    vmem_limit = max(32 << 20, footprint + (16 << 20))
    vmem_limit = int(min(vmem_limit, max(32 << 20, vmem_cap // 2)))

    kernel = _build_kernel(rows, tile, m, tiles_per_p, needs_mask)

    inter, denom = pl.pallas_call(
        kernel,
        out_shape=(
            jax.ShapeDtypeStruct((num_parallel, rows, _ACC_LANES), jnp.float32),
            jax.ShapeDtypeStruct((num_parallel, rows, _ACC_LANES), jnp.float32),
        ),
        grid_spec=pltpu.PrefetchScalarGridSpec(
            num_scalar_prefetch=0,
            grid=(num_parallel, tiles_per_p),
            in_specs=[
                pl.BlockSpec((rows, tile), in_map),
                pl.BlockSpec((rows, tile), in_map),
            ],
            out_specs=[
                pl.BlockSpec((None, rows, _ACC_LANES), out_map),
                pl.BlockSpec((None, rows, _ACC_LANES), out_map),
            ],
        ),
        compiler_params=pltpu.CompilerParams(
            dimension_semantics=("parallel", "arbitrary"),
            vmem_limit_bytes=vmem_limit,
        ),
    )(xr, tr)

    # Tiny finalize in plain JAX: fold parallel slices, packed sub-rows and the
    # 512-lane accumulators back to per-batch sums, then dice -> scalar loss.
    inter_b = inter.reshape(num_parallel, bs, s, _ACC_LANES).sum(axis=(0, 2, 3))
    denom_b = denom.reshape(num_parallel, bs, s, _ACC_LANES).sum(axis=(0, 2, 3))
    dice = (2.0 * inter_b + smooth) / (denom_b + smooth)
    return 1.0 - jnp.sum(dice) / bs


def _reference(x, target, smooth=1.0):
    bs = x.shape[0]
    xf = x.reshape(bs, -1).astype(jnp.float32)
    tf = target.reshape(bs, -1).astype(jnp.float32)
    inter = jnp.sum(xf * tf, axis=1)
    dice = (2.0 * inter + smooth) / (jnp.sum(xf, 1) + jnp.sum(tf, 1) + smooth)
    return 1.0 - jnp.sum(dice) / bs


if __name__ == "__main__":
    key = jax.random.PRNGKey(0)
    k1, k2, k3, k4, k5, k6, k7, k8, k9, k10 = jax.random.split(key, 10)

    # Case 1: NCHW segmentation-style inputs, f32 (matches the module's use).
    x1 = jax.nn.sigmoid(jax.random.normal(k1, (2, 4, 16, 16), dtype=jnp.float32))
    t1 = (jax.random.uniform(k2, (2, 4, 16, 16)) > 0.5).astype(jnp.float32)
    l1 = jax.block_until_ready(binary_dice_loss(x1, t1, smooth=1.0))
    r1 = jax.block_until_ready(_reference(x1, t1, smooth=1.0))
    assert jnp.allclose(l1, r1, atol=1e-4, rtol=1e-4), (l1, r1)

    # Case 2: awkward shape + bf16 (no pack factor divides N -> rows=bs, masked tail).
    x2 = jax.nn.sigmoid(jax.random.normal(k3, (3, 5, 7, 9))).astype(jnp.bfloat16)
    t2 = (jax.random.uniform(k4, (3, 5, 7, 9)) > 0.5).astype(jnp.bfloat16)
    l2 = jax.block_until_ready(binary_dice_loss(x2, t2, smooth=1.0))
    r2 = jax.block_until_ready(_reference(x2, t2, smooth=1.0))
    assert jnp.allclose(l2, r2, atol=1e-4, rtol=1e-4), (l2, r2)

    # Case 3: multi-step reduction with a ragged last tile (forced small tile).
    x3 = jax.nn.sigmoid(jax.random.normal(k5, (2, 4, 32, 24), dtype=jnp.float32))
    t3 = (jax.random.uniform(k6, (2, 4, 32, 24)) > 0.5).astype(jnp.float32)
    l3 = jax.block_until_ready(binary_dice_loss(x3, t3, smooth=1.0, tile_cols=512))
    r3 = jax.block_until_ready(_reference(x3, t3, smooth=1.0))
    assert jnp.allclose(l3, r3, atol=1e-4, rtol=1e-4), (l3, r3)

    # Case 4: forced 2-way parallel split with an odd tile count (clamped duplicate
    # tile + ragged tail), as used on v7x.
    x4 = jax.nn.sigmoid(jax.random.normal(k7, (2, 4, 48, 48), dtype=jnp.float32))
    t4 = (jax.random.uniform(k8, (2, 4, 48, 48)) > 0.5).astype(jnp.float32)
    l4 = jax.block_until_ready(
        binary_dice_loss(x4, t4, smooth=1.0, num_parallel=2, tile_cols=512))
    r4 = jax.block_until_ready(_reference(x4, t4, smooth=1.0))
    assert jnp.allclose(l4, r4, atol=1e-4, rtol=1e-4), (l4, r4)

    # Case 5: bf16 with full sublane packing (rows multiple of 16), unmasked path.
    x5 = jax.nn.sigmoid(jax.random.normal(k9, (2, 8, 32, 32))).astype(jnp.bfloat16)
    t5 = (jax.random.uniform(k10, (2, 8, 32, 32)) > 0.5).astype(jnp.bfloat16)
    l5 = jax.block_until_ready(binary_dice_loss(x5, t5, smooth=1.0))
    r5 = jax.block_until_ready(_reference(x5, t5, smooth=1.0))
    assert jnp.allclose(l5, r5, atol=1e-4, rtol=1e-4), (l5, r5)

    print("KERNEL_OK")
</pallas_src>

<mosaic_0001>
module attributes {stable_mosaic.version = 11 : i64} {
  func.func @kernel(%arg0: i32, %arg1: i32, %arg2: memref<8x512xf32, #tpu.memory_space<vmem>>, %arg3: memref<8x512xf32, #tpu.memory_space<vmem>>, %arg4: memref<1x8x512xf32, #tpu.memory_space<vmem>>, %arg5: memref<1x8x512xf32, #tpu.memory_space<vmem>>) attributes {dimension_semantics = [#tpu.dimension_semantics<parallel>, #tpu.dimension_semantics<arbitrary>], iteration_bounds = array<i64: 1, 1>, scalar_prefetch = 0 : i64, scratch_operands = 0 : i64, tpu.core_type = #tpu.core_type<tc>, window_params = [{transform_indices = @transform_0, window_bounds = array<i64: 8, 512>}, {transform_indices = @transform_1, window_bounds = array<i64: 8, 512>}, {transform_indices = @transform_2, window_bounds = array<i64: 1, 8, 512>}, {transform_indices = @transform_3, window_bounds = array<i64: 1, 8, 512>}]} {
    %c0_i32 = arith.constant 0 : i32
    %0 = arith.cmpi eq, %arg1, %c0_i32 : i32
    %1 = arith.extui %0 : i1 to i32
    %c0_i32_0 = arith.constant 0 : i32
    %2 = arith.cmpi ne, %1, %c0_i32_0 : i32
    scf.if %2 {
      %cst = arith.constant 0.000000e+00 : f32
      %15 = vector.broadcast %cst : f32 to vector<8x512xf32>
      %c0_7 = arith.constant 0 : index
      %c0_8 = arith.constant 0 : index
      %c0_9 = arith.constant 0 : index
      %16 = vector.load %arg4[%c0_7, %c0_8, %c0_9] : memref<1x8x512xf32, #tpu.memory_space<vmem>>, vector<1x8x512xf32>
      %17 = vector.shape_cast %16 : vector<1x8x512xf32> to vector<8x512xf32>
      %18 = vector.shape_cast %15 : vector<8x512xf32> to vector<1x8x512xf32>
      tpu.vector_store %arg4[%c0_7, %c0_8, %c0_9], %18 {strides = array<i32>} : memref<1x8x512xf32, #tpu.memory_space<vmem>>, vector<1x8x512xf32>,
      %cst_10 = arith.constant 0.000000e+00 : f32
      %19 = vector.broadcast %cst_10 : f32 to vector<8x512xf32>
      %c0_11 = arith.constant 0 : index
      %c0_12 = arith.constant 0 : index
      %c0_13 = arith.constant 0 : index
      %20 = vector.load %arg5[%c0_11, %c0_12, %c0_13] : memref<1x8x512xf32, #tpu.memory_space<vmem>>, vector<1x8x512xf32>
      %21 = vector.shape_cast %20 : vector<1x8x512xf32> to vector<8x512xf32>
      %22 = vector.shape_cast %19 : vector<8x512xf32> to vector<1x8x512xf32>
      tpu.vector_store %arg5[%c0_11, %c0_12, %c0_13], %22 {strides = array<i32>} : memref<1x8x512xf32, #tpu.memory_space<vmem>>, vector<1x8x512xf32>,
    } else {
    }
    %c0 = arith.constant 0 : index
    %c0_1 = arith.constant 0 : index
    %3 = vector.load %arg2[%c0, %c0_1] : memref<8x512xf32, #tpu.memory_space<vmem>>, vector<8x512xf32>
    %c0_2 = arith.constant 0 : index
    %c0_3 = arith.constant 0 : index
    %4 = vector.load %arg3[%c0_2, %c0_3] : memref<8x512xf32, #tpu.memory_space<vmem>>, vector<8x512xf32>
    %c1_i32 = arith.constant 1 : i32
    %5 = arith.muli %arg0, %c1_i32 : i32
    %6 = arith.addi %5, %arg1 : i32
    %c512_i32 = arith.constant 512 : i32
    %7 = arith.muli %6, %c512_i32 : i32
    %c512_i32_4 = arith.constant 512 : i32
    %8 = arith.addi %7, %c512_i32_4 : i32
    %c256_i32 = arith.constant 256 : i32
    %9 = arith.cmpi sle, %8, %c256_i32 : i32
    %10 = arith.extui %9 : i1 to i32
    %c0_i32_5 = arith.constant 0 : i32
    %11 = arith.cmpi ne, %10, %c0_i32_5 : i32
    scf.if %11 {
      %c0_7 = arith.constant 0 : index
      %c0_8 = arith.constant 0 : index
      %c0_9 = arith.constant 0 : index
      %15 = vector.load %arg4[%c0_7, %c0_8, %c0_9] : memref<1x8x512xf32, #tpu.memory_space<vmem>>, vector<1x8x512xf32>
      %16 = vector.shape_cast %15 : vector<1x8x512xf32> to vector<8x512xf32>
      %c0_10 = arith.constant 0 : index
      %c0_11 = arith.constant 0 : index
      %c0_12 = arith.constant 0 : index
      %17 = vector.load %arg5[%c0_10, %c0_11, %c0_12] : memref<1x8x512xf32, #tpu.memory_space<vmem>>, vector<1x8x512xf32>
      %18 = vector.shape_cast %17 : vector<1x8x512xf32> to vector<8x512xf32>
      %19 = arith.mulf %3, %4 : vector<8x512xf32>
      %20 = arith.addf %16, %19 : vector<8x512xf32>
      %21 = arith.addf %3, %4 : vector<8x512xf32>
      %22 = arith.addf %18, %21 : vector<8x512xf32>
      %c0_13 = arith.constant 0 : index
      %c0_14 = arith.constant 0 : index
      %c0_15 = arith.constant 0 : index
      %23 = vector.load %arg4[%c0_13, %c0_14, %c0_15] : memref<1x8x512xf32, #tpu.memory_space<vmem>>, vector<1x8x512xf32>
      %24 = vector.shape_cast %23 : vector<1x8x512xf32> to vector<8x512xf32>
      %25 = vector.shape_cast %20 : vector<8x512xf32> to vector<1x8x512xf32>
      tpu.vector_store %arg4[%c0_13, %c0_14, %c0_15], %25 {strides = array<i32>} : memref<1x8x512xf32, #tpu.memory_space<vmem>>, vector<1x8x512xf32>,
      %c0_16 = arith.constant 0 : index
      %c0_17 = arith.constant 0 : index
      %c0_18 = arith.constant 0 : index
      %26 = vector.load %arg5[%c0_16, %c0_17, %c0_18] : memref<1x8x512xf32, #tpu.memory_space<vmem>>, vector<1x8x512xf32>
      %27 = vector.shape_cast %26 : vector<1x8x512xf32> to vector<8x512xf32>
      %28 = vector.shape_cast %22 : vector<8x512xf32> to vector<1x8x512xf32>
      tpu.vector_store %arg5[%c0_16, %c0_17, %c0_18], %28 {strides = array<i32>} : memref<1x8x512xf32, #tpu.memory_space<vmem>>, vector<1x8x512xf32>,
    } else {
    }
    %true = arith.constant true
    %12 = arith.xori %9, %true : i1
    %13 = arith.extui %12 : i1 to i32
    %c0_i32_6 = arith.constant 0 : i32
    %14 = arith.cmpi ne, %13, %c0_i32_6 : i32
    scf.if %14 {
      %15 = tpu.iota {dimensions = array<i32: 1>} : vector<8x512xi32>
      %16 = vector.broadcast %7 : i32 to vector<8x512xi32>
      %17 = arith.addi %15, %16 : vector<8x512xi32>
      %c256_i32_7 = arith.constant 256 : i32
      %18 = vector.broadcast %c256_i32_7 : i32 to vector<8x512xi32>
      %19 = arith.cmpi slt, %17, %18 : vector<8x512xi32>
      %cst = arith.constant 0.000000e+00 : f32
      %20 = vector.broadcast %cst : f32 to vector<8x512xf32>
      %21 = arith.select %19, %3, %20 : vector<8x512xi1>, vector<8x512xf32>
      %22 = arith.select %19, %4, %20 : vector<8x512xi1>, vector<8x512xf32>
      %c0_8 = arith.constant 0 : index
      %c0_9 = arith.constant 0 : index
      %c0_10 = arith.constant 0 : index
      %23 = vector.load %arg4[%c0_8, %c0_9, %c0_10] : memref<1x8x512xf32, #tpu.memory_space<vmem>>, vector<1x8x512xf32>
      %24 = vector.shape_cast %23 : vector<1x8x512xf32> to vector<8x512xf32>
      %c0_11 = arith.constant 0 : index
      %c0_12 = arith.constant 0 : index
      %c0_13 = arith.constant 0 : index
      %25 = vector.load %arg5[%c0_11, %c0_12, %c0_13] : memref<1x8x512xf32, #tpu.memory_space<vmem>>, vector<1x8x512xf32>
      %26 = vector.shape_cast %25 : vector<1x8x512xf32> to vector<8x512xf32>
      %27 = arith.mulf %21, %22 : vector<8x512xf32>
      %28 = arith.addf %24, %27 : vector<8x512xf32>
      %29 = arith.addf %21, %22 : vector<8x512xf32>
      %30 = arith.addf %26, %29 : vector<8x512xf32>
      %c0_14 = arith.constant 0 : index
      %c0_15 = arith.constant 0 : index
      %c0_16 = arith.constant 0 : index
      %31 = vector.load %arg4[%c0_14, %c0_15, %c0_16] : memref<1x8x512xf32, #tpu.memory_space<vmem>>, vector<1x8x512xf32>
      %32 = vector.shape_cast %31 : vector<1x8x512xf32> to vector<8x512xf32>
      %33 = vector.shape_cast %28 : vector<8x512xf32> to vector<1x8x512xf32>
      tpu.vector_store %arg4[%c0_14, %c0_15, %c0_16], %33 {strides = array<i32>} : memref<1x8x512xf32, #tpu.memory_space<vmem>>, vector<1x8x512xf32>,
      %c0_17 = arith.constant 0 : index
      %c0_18 = arith.constant 0 : index
      %c0_19 = arith.constant 0 : index
      %34 = vector.load %arg5[%c0_17, %c0_18, %c0_19] : memref<1x8x512xf32, #tpu.memory_space<vmem>>, vector<1x8x512xf32>
      %35 = vector.shape_cast %34 : vector<1x8x512xf32> to vector<8x512xf32>
      %36 = vector.shape_cast %30 : vector<8x512xf32> to vector<1x8x512xf32>
      tpu.vector_store %arg5[%c0_17, %c0_18, %c0_19], %36 {strides = array<i32>} : memref<1x8x512xf32, #tpu.memory_space<vmem>>, vector<1x8x512xf32>,
    } else {
    }
    return
  }
  func.func @transform_0(%arg0: i32, %arg1: i32) -> (i32, i32) {
    %c1_i32 = arith.constant 1 : i32
    %0 = arith.muli %arg0, %c1_i32 : i32
    %1 = arith.addi %0, %arg1 : i32
    %c0_i32 = arith.constant 0 : i32
    %c0_i32_0 = arith.constant 0 : i32
    return %c0_i32, %1 : i32, i32
  }
  func.func @transform_1(%arg0: i32, %arg1: i32) -> (i32, i32) {
    %c1_i32 = arith.constant 1 : i32
    %0 = arith.muli %arg0, %c1_i32 : i32
    %1 = arith.addi %0, %arg1 : i32
    %c0_i32 = arith.constant 0 : i32
    %c0_i32_0 = arith.constant 0 : i32
    return %c0_i32, %1 : i32, i32
  }
  func.func @transform_2(%arg0: i32, %arg1: i32) -> (i32, i32, i32) {
    %c0_i32 = arith.constant 0 : i32
    %c0_i32_0 = arith.constant 0 : i32
    %c0_i32_1 = arith.constant 0 : i32
    return %arg0, %c0_i32, %c0_i32_0 : i32, i32, i32
  }
  func.func @transform_3(%arg0: i32, %arg1: i32) -> (i32, i32, i32) {
    %c0_i32 = arith.constant 0 : i32
    %c0_i32_0 = arith.constant 0 : i32
    %c0_i32_1 = arith.constant 0 : i32
    return %arg0, %c0_i32, %c0_i32_0 : i32, i32, i32
  }
}

</mosaic_0001>

<llo_original>
// kernel: tpu_custom_call.1
$region0: #{tpu_custom_call.1}
  #allocation0 [shape = 'u32[]', space=smem, size = 0x4, offset = 0x4, fixed_abs, tag = 'smem constant byte address 0x4 - core index']
  #allocation1 [shape = 'u32[144,128]{1,0:T(1,128)}', space=vmem, size = 0x12000, scoped, tag = 'internal scratch']
  %s0 = inlined_call_operand.hbm [shape: f32[8,256], index: 0, kind: input, shape index: {}]
  %s1 = inlined_call_operand.hbm [shape: f32[8,256], index: 1, kind: input, shape index: {}]
  %s2 = inlined_call_operand.hbm [shape: f32[1,8,512], index: 2, kind: output, shape index: {0}]
  %s3 = inlined_call_operand.hbm [shape: f32[1,8,512], index: 3, kind: output, shape index: {1}]
  %4 = xla_tuple %s2, %s3
  %s5 = sld [smem:[#allocation0]]
  $region46: #{tpu_custom_call.1} parent=0
    _
  %s7 = ssub.s32 1, %s5
  %s8 = scalar_select 0, %s7, %s5
  $region1: #{tpu_custom_call.1} parent=0
    #allocation2 [shape = 'u8[16384]{0}', space=vmem, size = 0x4000, scoped, tag = 'input window, operand 0, single buffered']
    #allocation3 [shape = 's32[1]{0}', space=sflag, size = 0x4, scoped, tag = 'scoped memory for tpu_custom_call.1']
    #allocation4 [shape = 's32[1]{0}', space=sflag, size = 0x4, scoped, tag = 'scoped memory for tpu_custom_call.1']
    #allocation5 [shape = 'u8[16384]{0}', space=vmem, size = 0x4000, scoped, tag = 'input window, operand 1, single buffered']
    #allocation6 [shape = 's32[1]{0}', space=sflag, size = 0x4, scoped, tag = 'scoped memory for tpu_custom_call.1']
    #allocation7 [shape = 'u8[16384]{0}', space=vmem, size = 0x4000, scoped, tag = 'output window, operand 0, single buffered']
    #allocation8 [shape = 'u8[16384]{0}', space=vmem, size = 0x4000, scoped, tag = 'output window, operand 1, single buffered']
    #allocation9 [shape = 's32[1]{0}', space=sflag, size = 0x4, scoped, tag = 'scoped memory for tpu_custom_call.1']
    %9 = vsyncpa [#allocation3], 0
    %10 = vsyncpa [#allocation6], 0
    %11 = vsyncpa [#allocation4], 0
    %12 = vsyncpa [#allocation9], 0
    // Predicated region
    $region2: #{tpu_custom_call.1} parent=1 // pred_check
      _
    $region3: #{tpu_custom_call.1} parent=1 // pred_check_branch
      %14 = sbr.rel (0) target = $region5
    $region4: #{tpu_custom_call.1} parent=1 // pred_region
      %s15 = sadd.s32 0, 0
      %s16 = smul.u32 4, %s15
      %s17 = ssub.s32 2, %s16
      %s18 = smul.u32 128, %s17
      %s20 = ssub.s32 512, %s18
      %21 = vsyncadd [#allocation3], %s20
      %p22 = scmp.ne.s32.totalorder 0, %s18
      %s23 = smul.addr %s16, 128
      %s24 = scalar_lea.hbm %s0, %s23
      %s25 = smul.u32 %s17, 8
      %s26 = sshll.u32 %s25, 4
      %s27 = sshll.u32 [#allocation2], 4
      %s28 = int_to_ptr.vmem [resolvable:$true] %s27
      %30 = dma.hbm_to_vmem [thread:$0]  (%p22), %s24, %s26, %s28, [#allocation3]
    $region5: #{tpu_custom_call.1} parent=1 // pred_fallthru
      _
    // Predicated region
    $region6: #{tpu_custom_call.1} parent=1 // pred_check
      _
    $region7: #{tpu_custom_call.1} parent=1 // pred_check_branch
      %32 = sbr.rel (0) target = $region9
    $region8: #{tpu_custom_call.1} parent=1 // pred_region
      %s33 = sadd.s32 0, 0
      %s34 = smul.u32 4, %s33
      %s35 = ssub.s32 2, %s34
      %s36 = smul.u32 128, %s35
      %s38 = ssub.s32 512, %s36
      %39 = vsyncadd [#allocation6], %s38
      %p40 = scmp.ne.s32.totalorder 0, %s36
      %s41 = smul.addr %s34, 128
      %s42 = scalar_lea.hbm %s1, %s41
      %s43 = smul.u32 %s35, 8
      %s44 = sshll.u32 %s43, 4
      %s45 = sshll.u32 [#allocation5], 4
      %s46 = int_to_ptr.vmem [resolvable:$true] %s45
      %48 = dma.hbm_to_vmem [thread:$0]  (%p40), %s42, %s44, %s46, [#allocation6]
    $region9: #{tpu_custom_call.1} parent=1 // pred_fallthru
      _
    // Predicated region
    $region10: #{tpu_custom_call.1} parent=1 // pred_check
      _
    $region11: #{tpu_custom_call.1} parent=1 // pred_check_branch
      %50 = sbr.rel (0) target = $region13
    $region12: #{tpu_custom_call.1} parent=1 // pred_region
      %51 = dma.done [#allocation3], 512
    $region13: #{tpu_custom_call.1} parent=1 // pred_fallthru
      _
    // Predicated region
    $region14: #{tpu_custom_call.1} parent=1 // pred_check
      _
    $region15: #{tpu_custom_call.1} parent=1 // pred_check_branch
      %53 = sbr.rel (0) target = $region17
    $region16: #{tpu_custom_call.1} parent=1 // pred_region
      %54 = dma.done [#allocation6], 512
    $region17: #{tpu_custom_call.1} parent=1 // pred_fallthru
      _
    %s55 = sadd.s32 0, 0
    %s56 = smul.u32 4, %s55
    %s57 = ssub.s32 2, %s56
    %s58 = smul.u32 128, %s57
    %s59 = sadd.s32 0, 0
    %s60 = smul.u32 4, %s59
    %s61 = ssub.s32 2, %s60
    %s62 = smul.u32 128, %s61
    %p63 = scmp.eq.s32.totalorder 0, 0
    // Predicated region
    $region18: #{tpu_custom_call.1} parent=1 // pred_check
      %p64 = pneg %p63
    $region19: #{tpu_custom_call.1} parent=1 // pred_check_branch
      %66 = sbr.rel (%p64) target = $region21
    $region20: #{tpu_custom_call.1} parent=1 // pred_region
      %67 = vst [vmem:[#allocation7] sm:$0xff] 0.0
      %68 = vst [vmem:[#allocation7 + $0x8] sm:$0xff] 0.0
      %69 = vst [vmem:[#allocation7 + $0x10] sm:$0xff] 0.0
      %70 = vst [vmem:[#allocation7 + $0x18] sm:$0xff] 0.0
      %71 = vst [vmem:[#allocation8] sm:$0xff] 0.0
      %72 = vst [vmem:[#allocation8 + $0x8] sm:$0xff] 0.0
      %73 = vst [vmem:[#allocation8 + $0x10] sm:$0xff] 0.0
      %74 = vst [vmem:[#allocation8 + $0x18] sm:$0xff] 0.0
    $region21: #{tpu_custom_call.1} parent=1 // pred_fallthru
      _
    %v75 = vld [vmem:[#allocation2] sm:$0xff]
    %v76 = vld [vmem:[#allocation2 + $0x8] sm:$0xff]
    %v77 = vld [vmem:[#allocation2 + $0x10] sm:$0xff]
    %v78 = vld [vmem:[#allocation2 + $0x18] sm:$0xff]
    %v79 = vld [vmem:[#allocation5] sm:$0xff]
    %v80 = vld [vmem:[#allocation5 + $0x8] sm:$0xff]
    %v81 = vld [vmem:[#allocation5 + $0x10] sm:$0xff]
    %v82 = vld [vmem:[#allocation5 + $0x18] sm:$0xff]
    %s83 = sadd.s32 0, 0
    %s84 = smul.u32 %s83, 512
    %s85 = sadd.s32 %s84, 512
    %p86 = scmp.le.s32.totalorder %s85, 256
    // Predicated region
    $region22: #{tpu_custom_call.1} parent=1 // pred_check
      %p87 = pneg %p86
    $region23: #{tpu_custom_call.1} parent=1 // pred_check_branch
      %89 = sbr.rel (%p87) target = $region25
    $region24: #{tpu_custom_call.1} parent=1 // pred_region
      %v90 = vld [vmem:[#allocation7] sm:$0xff]
      %v91 = vld [vmem:[#allocation7 + $0x8] sm:$0xff]
      %v92 = vld [vmem:[#allocation7 + $0x10] sm:$0xff]
      %v93 = vld [vmem:[#allocation7 + $0x18] sm:$0xff]
      %v94 = vld [vmem:[#allocation8] sm:$0xff]
      %v95 = vld [vmem:[#allocation8 + $0x8] sm:$0xff]
      %v96 = vld [vmem:[#allocation8 + $0x10] sm:$0xff]
      %v97 = vld [vmem:[#allocation8 + $0x18] sm:$0xff]
      %v98 = vmul.f32 %v75, %v79
      %v99 = vmul.f32 %v76, %v80
      %v100 = vmul.f32 %v77, %v81
      %v101 = vmul.f32 %v78, %v82
      %v102 = vadd.f32 %v90, %v98
      %v103 = vadd.f32 %v91, %v99
      %v104 = vadd.f32 %v92, %v100
      %v105 = vadd.f32 %v93, %v101
      %v106 = vadd.f32 %v75, %v79
      %v107 = vadd.f32 %v76, %v80
      %v108 = vadd.f32 %v77, %v81
      %v109 = vadd.f32 %v78, %v82
      %v110 = vadd.f32 %v94, %v106
      %v111 = vadd.f32 %v95, %v107
      %v112 = vadd.f32 %v96, %v108
      %v113 = vadd.f32 %v97, %v109
      %114 = vst [vmem:[#allocation7] sm:$0xff] %v102
      %115 = vst [vmem:[#allocation7 + $0x8] sm:$0xff] %v103
      %116 = vst [vmem:[#allocation7 + $0x10] sm:$0xff] %v104
      %117 = vst [vmem:[#allocation7 + $0x18] sm:$0xff] %v105
      %118 = vst [vmem:[#allocation8] sm:$0xff] %v110
      %119 = vst [vmem:[#allocation8 + $0x8] sm:$0xff] %v111
      %120 = vst [vmem:[#allocation8 + $0x10] sm:$0xff] %v112
      %121 = vst [vmem:[#allocation8 + $0x18] sm:$0xff] %v113
    $region25: #{tpu_custom_call.1} parent=1 // pred_fallthru
      _
    %p122 = scmp.gt.s32.totalorder %s85, 256
    // Predicated region
    $region26: #{tpu_custom_call.1} parent=1 // pred_check
      %p123 = pneg %p122
    $region27: #{tpu_custom_call.1} parent=1 // pred_check_branch
      %125 = sbr.rel (%p123) target = $region29
    $region28: #{tpu_custom_call.1} parent=1 // pred_region
      %v126 = vlaneseq
      %v127 = vand.u32 %v126, 127
      %v128 = vadd.s32 %v127, 128
      %v129 = vadd.s32 %v127, 256
      %v130 = vadd.s32 %v127, 384
      %v131 = vstv %s84
      %v132 = vadd.s32 %v127, %v131
      %v133 = vadd.s32 %v128, %v131
      %v134 = vadd.s32 %v129, %v131
      %v135 = vadd.s32 %v130, %v131
      %vm136 = vcmp.lt.s32.totalorder %v132, 256
      %vm137 = vcmp.lt.s32.totalorder %v133, 256
      %vm138 = vcmp.lt.s32.totalorder %v134, 256
      %vm139 = vcmp.lt.s32.totalorder %v135, 256
      %v140 = vsel %vm136, %v75, 0.0
      %v141 = vsel %vm137, %v76, 0.0
      %v142 = vsel %vm138, %v77, 0.0
      %v143 = vsel %vm139, %v78, 0.0
      %v144 = vsel %vm136, %v79, 0.0
      %v145 = vsel %vm137, %v80, 0.0
      %v146 = vsel %vm138, %v81, 0.0
      %v147 = vsel %vm139, %v82, 0.0
      %v148 = vld [vmem:[#allocation7] sm:$0xff]
      %v149 = vld [vmem:[#allocation7 + $0x8] sm:$0xff]
      %v150 = vld [vmem:[#allocation7 + $0x10] sm:$0xff]
      %v151 = vld [vmem:[#allocation7 + $0x18] sm:$0xff]
      %v152 = vld [vmem:[#allocation8] sm:$0xff]
      %v153 = vld [vmem:[#allocation8 + $0x8] sm:$0xff]
      %v154 = vld [vmem:[#allocation8 + $0x10] sm:$0xff]
      %v155 = vld [vmem:[#allocation8 + $0x18] sm:$0xff]
      %v156 = vmul.f32 %v140, %v144
      %v157 = vmul.f32 %v141, %v145
      %v158 = vmul.f32 %v142, %v146
      %v159 = vmul.f32 %v143, %v147
      %v160 = vadd.f32 %v148, %v156
      %v161 = vadd.f32 %v149, %v157
      %v162 = vadd.f32 %v150, %v158
      %v163 = vadd.f32 %v151, %v159
      %v164 = vadd.f32 %v140, %v144
      %v165 = vadd.f32 %v141, %v145
      %v166 = vadd.f32 %v142, %v146
      %v167 = vadd.f32 %v143, %v147
      %v168 = vadd.f32 %v152, %v164
      %v169 = vadd.f32 %v153, %v165
      %v170 = vadd.f32 %v154, %v166
      %v171 = vadd.f32 %v155, %v167
      %172 = vst [vmem:[#allocation7] sm:$0xff] %v160
      %173 = vst [vmem:[#allocation7 + $0x8] sm:$0xff] %v161
      %174 = vst [vmem:[#allocation7 + $0x10] sm:$0xff] %v162
      %175 = vst [vmem:[#allocation7 + $0x18] sm:$0xff] %v163
      %176 = vst [vmem:[#allocation8] sm:$0xff] %v168
      %177 = vst [vmem:[#allocation8 + $0x8] sm:$0xff] %v169
      %178 = vst [vmem:[#allocation8 + $0x10] sm:$0xff] %v170
      %179 = vst [vmem:[#allocation8 + $0x18] sm:$0xff] %v171
    $region29: #{tpu_custom_call.1} parent=1 // pred_fallthru
      _
    // Predicated region
    $region30: #{tpu_custom_call.1} parent=1 // pred_check
      _
    $region31: #{tpu_custom_call.1} parent=1 // pred_check_branch
      %181 = sbr.rel (0) target = $region33
    $region32: #{tpu_custom_call.1} parent=1 // pred_region
      %s183 = ssub.s32 512, 512
      %184 = vsyncadd [#allocation4], %s183
      %s186 = sshll.u32 [#allocation7], 4
      %s187 = int_to_ptr.vmem [resolvable:$true] %s186
      %189 = dma.vmem_to_hbm [thread:$0]  %s187, 512, %s2, [#allocation4]
    $region33: #{tpu_custom_call.1} parent=1 // pred_fallthru
      _
    // Predicated region
    $region34: #{tpu_custom_call.1} parent=1 // pred_check
      _
    $region35: #{tpu_custom_call.1} parent=1 // pred_check_branch
      %191 = sbr.rel (0) target = $region37
    $region36: #{tpu_custom_call.1} parent=1 // pred_region
      %s193 = ssub.s32 512, 512
      %194 = vsyncadd [#allocation9], %s193
      %s196 = sshll.u32 [#allocation8], 4
      %s197 = int_to_ptr.vmem [resolvable:$true] %s196
      %199 = dma.vmem_to_hbm [thread:$0]  %s197, 512, %s3, [#allocation9]
    $region37: #{tpu_custom_call.1} parent=1 // pred_fallthru
      _
    // Predicated region
    $region38: #{tpu_custom_call.1} parent=1 // pred_check
      _
    $region39: #{tpu_custom_call.1} parent=1 // pred_check_branch
      %201 = sbr.rel (0) target = $region41
    $region40: #{tpu_custom_call.1} parent=1 // pred_region
      %202 = dma.done [#allocation4], 512
    $region41: #{tpu_custom_call.1} parent=1 // pred_fallthru
      _
    // Predicated region
    $region42: #{tpu_custom_call.1} parent=1 // pred_check
      _
    $region43: #{tpu_custom_call.1} parent=1 // pred_check_branch
      %204 = sbr.rel (0) target = $region45
    $region44: #{tpu_custom_call.1} parent=1 // pred_region
      %205 = dma.done [#allocation9], 512
    $region45: #{tpu_custom_call.1} parent=1 // pred_fallthru
      _
    %206 = vsyncpa [#allocation3], 1
    %207 = vsyncpa [#allocation6], 1
    %208 = vsyncpa [#allocation4], 1
    %209 = vsyncpa [#allocation9], 1

</llo_original>
